<compile_context>
chip_gen: v5e
topology: v5e:2x2
jax: 0.10.0
libtpu: 0.0.40
codegen_flags: <defaults>
</compile_context>

<pallas_src>
import functools

import jax
import jax.numpy as jnp
from jax.experimental import pallas as pl
from jax.experimental.pallas import tpu as pltpu

EPS = 1e-5


# --------------------------------------------------------------------------- #
# Shared in-kernel helpers                                                    #
# --------------------------------------------------------------------------- #
def _accumulate_stats(x, j, mean_ref, m2_ref, *, tile_n, n_total, rem):
    """One step of per-tile two-pass stats + Chan's parallel-variance combine.

    x: (tile_n, C) float32 tile (rows >= valid count are masked when rem != 0).
    """
    if rem:
        rows = jax.lax.broadcasted_iota(jnp.int32, x.shape, 0)
        valid = (rows + j * jnp.int32(tile_n)) < jnp.int32(n_total)
        n_b = jnp.minimum(
            jnp.int32(tile_n),
            jnp.int32(n_total) - j * jnp.int32(tile_n)).astype(jnp.float32)
        xs = jnp.where(valid, x, 0.0)
    else:
        valid = None
        n_b = jnp.float32(tile_n)
        xs = x

    tile_mean = jnp.sum(xs, axis=0, keepdims=True) / n_b
    d = x - tile_mean
    if rem:
        d = jnp.where(valid, d, 0.0)
    tile_m2 = jnp.sum(d * d, axis=0, keepdims=True)

    # All tiles before the current one are full, so the exact running count is
    # j * tile_n (int32 -> f32; exact for realistic point counts).
    n_a = (j * jnp.int32(tile_n)).astype(jnp.float32)
    n_ab = n_a + n_b
    delta = tile_mean - mean_ref[...]
    mean_ref[...] = mean_ref[...] + delta * (n_b / n_ab)
    m2_ref[...] = m2_ref[...] + tile_m2 + (delta * delta) * (n_a * n_b / n_ab)


def _finalize_scale_shift(gamma_ref, beta_ref, mean_ref, m2_ref, *, n_total):
    # PyTorch training-mode BatchNorm1d normalizes with the biased variance.
    var = m2_ref[...] * (1.0 / n_total)
    scale = gamma_ref[...].astype(jnp.float32) * jax.lax.rsqrt(var + EPS)
    shift = beta_ref[...].astype(jnp.float32) - mean_ref[...] * scale
    return scale, shift


# --------------------------------------------------------------------------- #
# Fused (VMEM-cached) kernel: ref_feat is read from HBM exactly once.         #
# --------------------------------------------------------------------------- #
def _fused_bn_relu_kernel(x_ref, gamma_ref, beta_ref, o_ref,
                          cache_ref, mean_ref, m2_ref, scale_ref, shift_ref,
                          *, tile_n, n_total, rem):
    p = pl.program_id(0)          # phase: 0 = stats (+ cache fill), 1 = apply
    j = pl.program_id(1)          # point-tile index
    nj = pl.num_programs(1)

    @pl.when((p == 0) & (j == 0))
    def _init():
        mean_ref[...] = jnp.zeros_like(mean_ref)
        m2_ref[...] = jnp.zeros_like(m2_ref)

    @pl.when(p == 0)
    def _stats():
        xin = x_ref[...]
        cache_ref[j] = xin        # cache tile in VMEM; HBM never re-read
        _accumulate_stats(xin.astype(jnp.float32), j, mean_ref, m2_ref,
                          tile_n=tile_n, n_total=n_total, rem=rem)

    @pl.when((p == 0) & (j == nj - 1))
    def _finalize():
        scale, shift = _finalize_scale_shift(
            gamma_ref, beta_ref, mean_ref, m2_ref, n_total=n_total)
        scale_ref[...] = scale
        shift_ref[...] = shift

    @pl.when(p == 1)
    def _apply():
        x = cache_ref[j].astype(jnp.float32)
        y = x * scale_ref[...] + shift_ref[...]
        o_ref[...] = jnp.maximum(y, 0.0).astype(o_ref.dtype)


# --------------------------------------------------------------------------- #
# Streaming path (feature tensor does not fit VMEM): stats + parallel apply.  #
# --------------------------------------------------------------------------- #
def _stats_kernel(x_ref, gamma_ref, beta_ref, scale_ref, shift_ref,
                  mean_ref, m2_ref, *, tile_n, n_total, rem):
    j = pl.program_id(0)
    nj = pl.num_programs(0)

    @pl.when(j == 0)
    def _init():
        mean_ref[...] = jnp.zeros_like(mean_ref)
        m2_ref[...] = jnp.zeros_like(m2_ref)

    _accumulate_stats(x_ref[...].astype(jnp.float32), j, mean_ref, m2_ref,
                      tile_n=tile_n, n_total=n_total, rem=rem)

    @pl.when(j == nj - 1)
    def _final():
        scale, shift = _finalize_scale_shift(
            gamma_ref, beta_ref, mean_ref, m2_ref, n_total=n_total)
        scale_ref[...] = scale
        shift_ref[...] = shift


def _apply_bn_relu_kernel(x_ref, scale_ref, shift_ref, o_ref):
    y = x_ref[...].astype(jnp.float32) * scale_ref[...] + shift_ref[...]
    o_ref[...] = jnp.maximum(y, 0.0).astype(o_ref.dtype)


# --------------------------------------------------------------------------- #
# Host-side wrapper                                                            #
# --------------------------------------------------------------------------- #
def _vmem_capacity_bytes():
    try:
        cap = int(getattr(pltpu.get_tpu_info(), "vmem_capacity_bytes"))
        if cap > 0:
            return cap
    except Exception:
        pass
    try:
        kind = jax.devices()[0].device_kind.lower()
    except Exception:
        kind = ""
    if "v7" in kind:
        return 64 << 20
    return 128 << 20            # v5e / v6e and most other TensorCore parts


def down_block_forward(ref_bxyz, ref_feat, gamma, beta, *,
                       tile_bytes_target=1 << 20, out_dtype=None,
                       force_streaming=False):
    """y = ReLU(BatchNorm1d(ref_feat)); ref_bxyz passes through unchanged."""
    N, C = ref_feat.shape
    out_dtype = ref_feat.dtype if out_dtype is None else jnp.dtype(out_dtype)
    in_item = jnp.dtype(ref_feat.dtype).itemsize
    out_item = jnp.dtype(out_dtype).itemsize

    # Byte-budgeted tile: ~tile_bytes_target per input tile, multiple-of-8 rows.
    tile_n = max(8, (int(tile_bytes_target) // max(1, C * in_item)) // 8 * 8)
    tile_n = min(tile_n, 4096)
    if tile_n >= N:
        tile_n = N                 # single full-extent tile (no (8,) constraint)
    num_tiles = int(pl.cdiv(N, tile_n))
    rem = N % tile_n               # static flag: last tile is partial if != 0

    gamma2 = gamma.reshape(1, C).astype(jnp.float32)
    beta2 = beta.reshape(1, C).astype(jnp.float32)

    cap = _vmem_capacity_bytes()
    vmem_target = int(cap * 0.75)  # explicit headroom for compiler scratch

    tile_in = tile_n * C * in_item
    tile_out = tile_n * C * out_item
    cache_bytes = num_tiles * tile_n * C * in_item
    fused_need = (cache_bytes           # whole-feature VMEM cache
                  + 2 * tile_in         # double-buffered input tiles (phase 0)
                  + 2 * tile_out        # double-buffered output tiles (phase 1)
                  + 8 * C * 4           # params + (1,C) stats scratch
                  + (2 << 20))          # compiler margin
    use_cache = (not force_streaming) and (fused_need <= vmem_target)

    if use_cache:
        last = num_tiles - 1
        out = pl.pallas_call(
            functools.partial(_fused_bn_relu_kernel, tile_n=tile_n,
                              n_total=N, rem=rem),
            out_shape=jax.ShapeDtypeStruct((N, C), out_dtype),
            grid=(2, num_tiles),
            in_specs=[
                # Phase 0 walks the tiles; phase 1 stays pinned on the last
                # phase-0 block so ref_feat is DMA'd from HBM exactly once.
                pl.BlockSpec((tile_n, C), lambda p, j: ((1 - p) * j + p * last, 0)),
                pl.BlockSpec((1, C), lambda p, j: (0, 0)),   # gamma
                pl.BlockSpec((1, C), lambda p, j: (0, 0)),   # beta
            ],
            # Block 0 stays resident (unwritten) through phase 0; writebacks
            # only happen when the block index changes during phase 1 -> no
            # garbage ever reaches HBM (standard accumulator-resident pattern).
            out_specs=pl.BlockSpec((tile_n, C), lambda p, j: (p * j, 0)),
            scratch_shapes=[
                pltpu.VMEM((num_tiles, tile_n, C), ref_feat.dtype),  # cache
                pltpu.VMEM((1, C), jnp.float32),                     # mean
                pltpu.VMEM((1, C), jnp.float32),                     # M2
                pltpu.VMEM((1, C), jnp.float32),                     # scale
                pltpu.VMEM((1, C), jnp.float32),                     # shift
            ],
            compiler_params=pltpu.CompilerParams(
                dimension_semantics=("arbitrary", "arbitrary"),
                vmem_limit_bytes=vmem_target,
            ),
        )(ref_feat, gamma2, beta2)
        return ref_bxyz, out

    # ---- Streaming path: stats pass, then a "parallel" apply pass so the
    # ---- HBM-bound apply phase shards across both v7x TensorCores.
    scale, shift = pl.pallas_call(
        functools.partial(_stats_kernel, tile_n=tile_n, n_total=N, rem=rem),
        out_shape=(jax.ShapeDtypeStruct((1, C), jnp.float32),
                   jax.ShapeDtypeStruct((1, C), jnp.float32)),
        grid=(num_tiles,),
        in_specs=[
            pl.BlockSpec((tile_n, C), lambda j: (j, 0)),
            pl.BlockSpec((1, C), lambda j: (0, 0)),
            pl.BlockSpec((1, C), lambda j: (0, 0)),
        ],
        out_specs=(pl.BlockSpec((1, C), lambda j: (0, 0)),
                   pl.BlockSpec((1, C), lambda j: (0, 0))),
        scratch_shapes=[pltpu.VMEM((1, C), jnp.float32),
                        pltpu.VMEM((1, C), jnp.float32)],
        compiler_params=pltpu.CompilerParams(
            dimension_semantics=("arbitrary",),
            vmem_limit_bytes=vmem_target,
        ),
    )(ref_feat, gamma2, beta2)

    out = pl.pallas_call(
        _apply_bn_relu_kernel,
        out_shape=jax.ShapeDtypeStruct((N, C), out_dtype),
        grid=(num_tiles,),
        in_specs=[
            pl.BlockSpec((tile_n, C), lambda j: (j, 0)),
            pl.BlockSpec((1, C), lambda j: (0, 0)),
            pl.BlockSpec((1, C), lambda j: (0, 0)),
        ],
        out_specs=pl.BlockSpec((tile_n, C), lambda j: (j, 0)),
        compiler_params=pltpu.CompilerParams(
            dimension_semantics=("parallel",),
            vmem_limit_bytes=vmem_target,
        ),
    )(ref_feat, scale, shift)

    return ref_bxyz, out


# --------------------------------------------------------------------------- #
# Reference + self-test                                                        #
# --------------------------------------------------------------------------- #
def _reference(ref_feat, gamma, beta):
    x = ref_feat.astype(jnp.float32)
    mean = jnp.mean(x, axis=0, keepdims=True)
    var = jnp.mean((x - mean) ** 2, axis=0, keepdims=True)  # biased
    y = (x - mean) * jax.lax.rsqrt(var + EPS) * gamma[None, :] + beta[None, :]
    return jnp.maximum(y, 0.0)


if __name__ == "__main__":
    key = jax.random.PRNGKey(0)
    k1, k2, k3, k4 = jax.random.split(key, 4)

    C = 128
    gamma = 1.0 + 0.1 * jax.random.normal(k3, (C,), dtype=jnp.float32)
    beta = 0.1 * jax.random.normal(k4, (C,), dtype=jnp.float32)

    # 1) Small config (OUTPUT_CHANNEL=128): fused VMEM-cached single-tile path.
    N = 256
    ref_bxyz = jax.random.uniform(k1, (N, 4), dtype=jnp.float32)
    ref_feat = jax.random.normal(k2, (N, C), dtype=jnp.float32) + 3.0
    bxyz_out, feat_out = down_block_forward(ref_bxyz, ref_feat, gamma, beta)
    jax.block_until_ready(feat_out)
    expected = _reference(ref_feat, gamma, beta)
    assert feat_out.shape == (N, C)
    assert jnp.allclose(feat_out, expected, atol=1e-4, rtol=1e-4), (
        float(jnp.max(jnp.abs(feat_out - expected))))
    assert jnp.allclose(bxyz_out, ref_bxyz)

    # 2) Cached multi-tile path with a remainder tile (N not multiple of tile_n).
    N2 = 1000
    feat2 = 2.0 * jax.random.normal(jax.random.PRNGKey(1), (N2, C),
                                    dtype=jnp.float32) + 5.0
    bxyz2 = jax.random.uniform(jax.random.PRNGKey(2), (N2, 4), dtype=jnp.float32)
    _, out2 = down_block_forward(bxyz2, feat2, gamma, beta,
                                 tile_bytes_target=64 << 10)
    jax.block_until_ready(out2)
    exp2 = _reference(feat2, gamma, beta)
    assert jnp.allclose(out2, exp2, atol=1e-4, rtol=1e-4), (
        float(jnp.max(jnp.abs(out2 - exp2))))

    # 3) Streaming two-kernel path (stats "arbitrary" + apply "parallel").
    _, out3 = down_block_forward(bxyz2, feat2, gamma, beta,
                                 tile_bytes_target=64 << 10,
                                 force_streaming=True)
    jax.block_until_ready(out3)
    assert jnp.allclose(out3, exp2, atol=1e-4, rtol=1e-4), (
        float(jnp.max(jnp.abs(out3 - exp2))))

    # 4) bf16 feature path (halved HBM traffic; stats still accumulate in f32).
    feat_bf16 = (jax.random.normal(jax.random.PRNGKey(3), (512, C),
                                   dtype=jnp.float32) + 1.0).astype(jnp.bfloat16)
    bxyz4 = jax.random.uniform(jax.random.PRNGKey(4), (512, 4), dtype=jnp.float32)
    _, out4 = down_block_forward(bxyz4, feat_bf16, gamma, beta)
    jax.block_until_ready(out4)
    exp4 = _reference(feat_bf16.astype(jnp.float32), gamma, beta)
    assert out4.dtype == jnp.bfloat16
    assert jnp.allclose(out4.astype(jnp.float32), exp4, atol=3e-2, rtol=3e-2), (
        float(jnp.max(jnp.abs(out4.astype(jnp.float32) - exp4))))

    print("KERNEL_OK")
</pallas_src>

<mosaic_0001>
module attributes {stable_mosaic.version = 11 : i64} {
  func.func @_fused_bn_relu_kernel(%arg0: i32, %arg1: i32, %arg2: memref<256x128xf32, #tpu.memory_space<vmem>>, %arg3: memref<1x128xf32, #tpu.memory_space<vmem>>, %arg4: memref<1x128xf32, #tpu.memory_space<vmem>>, %arg5: memref<256x128xf32, #tpu.memory_space<vmem>>, %arg6: memref<1x256x128xf32, #tpu.memory_space<vmem>>, %arg7: memref<1x128xf32, #tpu.memory_space<vmem>>, %arg8: memref<1x128xf32, #tpu.memory_space<vmem>>, %arg9: memref<1x128xf32, #tpu.memory_space<vmem>>, %arg10: memref<1x128xf32, #tpu.memory_space<vmem>>) attributes {dimension_semantics = [#tpu.dimension_semantics<arbitrary>, #tpu.dimension_semantics<arbitrary>], iteration_bounds = array<i64: 2, 1>, scalar_prefetch = 0 : i64, scratch_operands = 5 : i64, tpu.core_type = #tpu.core_type<tc>, window_params = [{transform_indices = @transform_0, window_bounds = array<i64: 256, 128>}, {pipeline_mode = #tpu.pipeline_mode<synchronous>, transform_indices = @transform_1, window_bounds = array<i64: 1, 128>}, {pipeline_mode = #tpu.pipeline_mode<synchronous>, transform_indices = @transform_2, window_bounds = array<i64: 1, 128>}, {transform_indices = @transform_3, window_bounds = array<i64: 256, 128>}]} {
    %c0_i32 = arith.constant 0 : i32
    %0 = arith.cmpi eq, %arg0, %c0_i32 : i32
    %c0_i32_0 = arith.constant 0 : i32
    %1 = arith.cmpi eq, %arg1, %c0_i32_0 : i32
    %2 = arith.andi %0, %1 : i1
    %3 = arith.extui %2 : i1 to i32
    %c0_i32_1 = arith.constant 0 : i32
    %4 = arith.cmpi ne, %3, %c0_i32_1 : i32
    scf.if %4 {
      %cst = arith.constant 0.000000e+00 : f32
      %16 = vector.broadcast %cst : f32 to vector<1x128xf32>
      %c0 = arith.constant 0 : index
      %c0_8 = arith.constant 0 : index
      %17 = vector.load %arg7[%c0, %c0_8] : memref<1x128xf32, #tpu.memory_space<vmem>>, vector<1x128xf32>
      tpu.vector_store %arg7[%c0, %c0_8], %16 {strides = array<i32>} : memref<1x128xf32, #tpu.memory_space<vmem>>, vector<1x128xf32>,
      %cst_9 = arith.constant 0.000000e+00 : f32
      %18 = vector.broadcast %cst_9 : f32 to vector<1x128xf32>
      %c0_10 = arith.constant 0 : index
      %c0_11 = arith.constant 0 : index
      %19 = vector.load %arg8[%c0_10, %c0_11] : memref<1x128xf32, #tpu.memory_space<vmem>>, vector<1x128xf32>
      tpu.vector_store %arg8[%c0_10, %c0_11], %18 {strides = array<i32>} : memref<1x128xf32, #tpu.memory_space<vmem>>, vector<1x128xf32>,
    } else {
    }
    %c0_i32_2 = arith.constant 0 : i32
    %5 = arith.cmpi eq, %arg0, %c0_i32_2 : i32
    %6 = arith.extui %5 : i1 to i32
    %c0_i32_3 = arith.constant 0 : i32
    %7 = arith.cmpi ne, %6, %c0_i32_3 : i32
    scf.if %7 {
      %c0 = arith.constant 0 : index
      %c0_8 = arith.constant 0 : index
      %16 = vector.load %arg2[%c0, %c0_8] : memref<256x128xf32, #tpu.memory_space<vmem>>, vector<256x128xf32>
      %17 = arith.index_cast %arg1 : i32 to index
      %c0_9 = arith.constant 0 : index
      %c0_10 = arith.constant 0 : index
      %18 = vector.load %arg6[%17, %c0_9, %c0_10] : memref<1x256x128xf32, #tpu.memory_space<vmem>>, vector<1x256x128xf32>
      %19 = vector.shape_cast %18 : vector<1x256x128xf32> to vector<256x128xf32>
      %20 = vector.shape_cast %16 : vector<256x128xf32> to vector<1x256x128xf32>
      tpu.vector_store %arg6[%17, %c0_9, %c0_10], %20 {strides = array<i32>} : memref<1x256x128xf32, #tpu.memory_space<vmem>>, vector<1x256x128xf32>,
      %cst = arith.constant dense<0.000000e+00> : vector<128xf32>
      %21 = vector.multi_reduction <add>, %16, %cst [0] : vector<256x128xf32> to vector<128xf32>
      %22 = vector.shape_cast %21 : vector<128xf32> to vector<1x128xf32>
      %cst_11 = arith.constant 2.560000e+02 : f32
      %23 = vector.broadcast %cst_11 : f32 to vector<1x128xf32>
      %24 = arith.divf %22, %23 : vector<1x128xf32>
      %25 = vector.broadcast %24 : vector<1x128xf32> to vector<256x128xf32>
      %26 = arith.subf %16, %25 : vector<256x128xf32>
      %27 = arith.mulf %26, %26 : vector<256x128xf32>
      %cst_12 = arith.constant dense<0.000000e+00> : vector<128xf32>
      %28 = vector.multi_reduction <add>, %27, %cst_12 [0] : vector<256x128xf32> to vector<128xf32>
      %29 = vector.shape_cast %28 : vector<128xf32> to vector<1x128xf32>
      %c256_i32 = arith.constant 256 : i32
      %30 = arith.muli %arg1, %c256_i32 : i32
      %31 = arith.sitofp %30 : i32 to f32
      %cst_13 = arith.constant 2.560000e+02 : f32
      %32 = arith.addf %31, %cst_13 : f32
      %c0_14 = arith.constant 0 : index
      %c0_15 = arith.constant 0 : index
      %33 = vector.load %arg7[%c0_14, %c0_15] : memref<1x128xf32, #tpu.memory_space<vmem>>, vector<1x128xf32>
      %34 = arith.subf %24, %33 : vector<1x128xf32>
      %c0_16 = arith.constant 0 : index
      %c0_17 = arith.constant 0 : index
      %35 = vector.load %arg7[%c0_16, %c0_17] : memref<1x128xf32, #tpu.memory_space<vmem>>, vector<1x128xf32>
      %cst_18 = arith.constant 2.560000e+02 : f32
      %36 = arith.divf %cst_18, %32 : f32
      %37 = vector.broadcast %36 : f32 to vector<1x128xf32>
      %38 = arith.mulf %34, %37 : vector<1x128xf32>
      %39 = arith.addf %35, %38 : vector<1x128xf32>
      %c0_19 = arith.constant 0 : index
      %c0_20 = arith.constant 0 : index
      %40 = vector.load %arg7[%c0_19, %c0_20] : memref<1x128xf32, #tpu.memory_space<vmem>>, vector<1x128xf32>
      tpu.vector_store %arg7[%c0_19, %c0_20], %39 {strides = array<i32>} : memref<1x128xf32, #tpu.memory_space<vmem>>, vector<1x128xf32>,
      %c0_21 = arith.constant 0 : index
      %c0_22 = arith.constant 0 : index
      %41 = vector.load %arg8[%c0_21, %c0_22] : memref<1x128xf32, #tpu.memory_space<vmem>>, vector<1x128xf32>
      %42 = arith.addf %41, %29 : vector<1x128xf32>
      %43 = arith.mulf %34, %34 : vector<1x128xf32>
      %cst_23 = arith.constant 2.560000e+02 : f32
      %44 = arith.mulf %31, %cst_23 : f32
      %45 = arith.divf %44, %32 : f32
      %46 = vector.broadcast %45 : f32 to vector<1x128xf32>
      %47 = arith.mulf %43, %46 : vector<1x128xf32>
      %48 = arith.addf %42, %47 : vector<1x128xf32>
      %c0_24 = arith.constant 0 : index
      %c0_25 = arith.constant 0 : index
      %49 = vector.load %arg8[%c0_24, %c0_25] : memref<1x128xf32, #tpu.memory_space<vmem>>, vector<1x128xf32>
      tpu.vector_store %arg8[%c0_24, %c0_25], %48 {strides = array<i32>} : memref<1x128xf32, #tpu.memory_space<vmem>>, vector<1x128xf32>,
    } else {
    }
    %c0_i32_4 = arith.constant 0 : i32
    %8 = arith.cmpi eq, %arg0, %c0_i32_4 : i32
    %c0_i32_5 = arith.constant 0 : i32
    %9 = arith.cmpi eq, %arg1, %c0_i32_5 : i32
    %10 = arith.andi %8, %9 : i1
    %11 = arith.extui %10 : i1 to i32
    %c0_i32_6 = arith.constant 0 : i32
    %12 = arith.cmpi ne, %11, %c0_i32_6 : i32
    scf.if %12 {
      %c0 = arith.constant 0 : index
      %c0_8 = arith.constant 0 : index
      %16 = vector.load %arg8[%c0, %c0_8] : memref<1x128xf32, #tpu.memory_space<vmem>>, vector<1x128xf32>
      %cst = arith.constant 3.906250e-03 : f32
      %17 = vector.broadcast %cst : f32 to vector<1x128xf32>
      %18 = arith.mulf %16, %17 : vector<1x128xf32>
      %c0_9 = arith.constant 0 : index
      %c0_10 = arith.constant 0 : index
      %19 = vector.load %arg3[%c0_9, %c0_10] : memref<1x128xf32, #tpu.memory_space<vmem>>, vector<1x128xf32>
      %cst_11 = arith.constant 9.99999974E-6 : f32
      %20 = vector.broadcast %cst_11 : f32 to vector<1x128xf32>
      %21 = arith.addf %18, %20 : vector<1x128xf32>
      %22 = math.rsqrt %21 : vector<1x128xf32>
      %23 = arith.mulf %19, %22 : vector<1x128xf32>
      %c0_12 = arith.constant 0 : index
      %c0_13 = arith.constant 0 : index
      %24 = vector.load %arg4[%c0_12, %c0_13] : memref<1x128xf32, #tpu.memory_space<vmem>>, vector<1x128xf32>
      %c0_14 = arith.constant 0 : index
      %c0_15 = arith.constant 0 : index
      %25 = vector.load %arg7[%c0_14, %c0_15] : memref<1x128xf32, #tpu.memory_space<vmem>>, vector<1x128xf32>
      %26 = arith.mulf %25, %23 : vector<1x128xf32>
      %27 = arith.subf %24, %26 : vector<1x128xf32>
      %c0_16 = arith.constant 0 : index
      %c0_17 = arith.constant 0 : index
      %28 = vector.load %arg9[%c0_16, %c0_17] : memref<1x128xf32, #tpu.memory_space<vmem>>, vector<1x128xf32>
      tpu.vector_store %arg9[%c0_16, %c0_17], %23 {strides = array<i32>} : memref<1x128xf32, #tpu.memory_space<vmem>>, vector<1x128xf32>,
      %c0_18 = arith.constant 0 : index
      %c0_19 = arith.constant 0 : index
      %29 = vector.load %arg10[%c0_18, %c0_19] : memref<1x128xf32, #tpu.memory_space<vmem>>, vector<1x128xf32>
      tpu.vector_store %arg10[%c0_18, %c0_19], %27 {strides = array<i32>} : memref<1x128xf32, #tpu.memory_space<vmem>>, vector<1x128xf32>,
    } else {
    }
    %c1_i32 = arith.constant 1 : i32
    %13 = arith.cmpi eq, %arg0, %c1_i32 : i32
    %14 = arith.extui %13 : i1 to i32
    %c0_i32_7 = arith.constant 0 : i32
    %15 = arith.cmpi ne, %14, %c0_i32_7 : i32
    scf.if %15 {
      %16 = arith.index_cast %arg1 : i32 to index
      %c0 = arith.constant 0 : index
      %c0_8 = arith.constant 0 : index
      %17 = vector.load %arg6[%16, %c0, %c0_8] : memref<1x256x128xf32, #tpu.memory_space<vmem>>, vector<1x256x128xf32>
      %18 = vector.shape_cast %17 : vector<1x256x128xf32> to vector<256x128xf32>
      %c0_9 = arith.constant 0 : index
      %c0_10 = arith.constant 0 : index
      %19 = vector.load %arg9[%c0_9, %c0_10] : memref<1x128xf32, #tpu.memory_space<vmem>>, vector<1x128xf32>
      %20 = vector.broadcast %19 : vector<1x128xf32> to vector<256x128xf32>
      %21 = arith.mulf %18, %20 : vector<256x128xf32>
      %c0_11 = arith.constant 0 : index
      %c0_12 = arith.constant 0 : index
      %22 = vector.load %arg10[%c0_11, %c0_12] : memref<1x128xf32, #tpu.memory_space<vmem>>, vector<1x128xf32>
      %23 = vector.broadcast %22 : vector<1x128xf32> to vector<256x128xf32>
      %24 = arith.addf %21, %23 : vector<256x128xf32>
      %cst = arith.constant 0.000000e+00 : f32
      %25 = vector.broadcast %cst : f32 to vector<256x128xf32>
      %26 = arith.maximumf %24, %25 : vector<256x128xf32>
      %c0_13 = arith.constant 0 : index
      %c0_14 = arith.constant 0 : index
      %27 = vector.load %arg5[%c0_13, %c0_14] : memref<256x128xf32, #tpu.memory_space<vmem>>, vector<256x128xf32>
      tpu.vector_store %arg5[%c0_13, %c0_14], %26 {strides = array<i32>} : memref<256x128xf32, #tpu.memory_space<vmem>>, vector<256x128xf32>,
    } else {
    }
    return
  }
  func.func @transform_0(%arg0: i32, %arg1: i32) -> (i32, i32) {
    %c1_i32 = arith.constant 1 : i32
    %0 = arith.subi %c1_i32, %arg0 : i32
    %1 = arith.muli %0, %arg1 : i32
    %c0_i32 = arith.constant 0 : i32
    %2 = arith.muli %arg0, %c0_i32 : i32
    %3 = arith.addi %1, %2 : i32
    %c0_i32_0 = arith.constant 0 : i32
    %c0_i32_1 = arith.constant 0 : i32
    return %3, %c0_i32_0 : i32, i32
  }
  func.func @transform_1(%arg0: i32, %arg1: i32) -> (i32, i32) {
    %c0_i32 = arith.constant 0 : i32
    %c0_i32_0 = arith.constant 0 : i32
    %c0_i32_1 = arith.constant 0 : i32
    return %c0_i32, %c0_i32_0 : i32, i32
  }
  func.func @transform_2(%arg0: i32, %arg1: i32) -> (i32, i32) {
    %c0_i32 = arith.constant 0 : i32
    %c0_i32_0 = arith.constant 0 : i32
    %c0_i32_1 = arith.constant 0 : i32
    return %c0_i32, %c0_i32_0 : i32, i32
  }
  func.func @transform_3(%arg0: i32, %arg1: i32) -> (i32, i32) {
    %0 = arith.muli %arg0, %arg1 : i32
    %c0_i32 = arith.constant 0 : i32
    %c0_i32_0 = arith.constant 0 : i32
    return %0, %c0_i32 : i32, i32
  }
}

</mosaic_0001>

<llo_original>
// kernel: tpu_custom_call.1
$region0: #{tpu_custom_call.1}
  #allocation0 [shape = 'u32[]', space=smem, size = 0x4, offset = 0x4, fixed_abs, tag = 'smem constant byte address 0x4 - core index']
  #allocation1 [shape = 'u32[72,128]{1,0:T(1,128)}', space=vmem, size = 0x9000, scoped, tag = 'internal scratch']
  #allocation2 [shape = 'f32[1,256,128]{2,1,0:T(8,128)}', space=vmem, size = 0x20000, scoped, tag = 'scratch operand']
  #allocation3 [shape = 'f32[1,128]{1,0:T(1,128)}', space=vmem, size = 0x200, scoped, tag = 'scratch operand']
  #allocation4 [shape = 'f32[1,128]{1,0:T(1,128)}', space=vmem, size = 0x200, scoped, tag = 'scratch operand']
  #allocation5 [shape = 'f32[1,128]{1,0:T(1,128)}', space=vmem, size = 0x200, scoped, tag = 'scratch operand']
  #allocation6 [shape = 'f32[1,128]{1,0:T(1,128)}', space=vmem, size = 0x200, scoped, tag = 'scratch operand']
  %s0 = inlined_call_operand.hbm [shape: f32[256,128], index: 0, kind: input, shape index: {}]
  %s1 = inlined_call_operand.hbm [shape: f32[1,128], index: 1, kind: input, shape index: {}]
  %s2 = inlined_call_operand.vmem [shape: f32[1,128], index: 2, kind: input, shape index: {}]
  %s3 = inlined_call_operand.hbm [shape: f32[256,128], index: 3, kind: output, shape index: {}]
  %s4 = sld [smem:[#allocation0]]
  $region69: #{tpu_custom_call.1} parent=0
    _
  %s6 = ssub.s32 1, %s4
  %s7 = scalar_select 0, %s6, %s4
  $region1: #{tpu_custom_call.1} parent=0
    #allocation7 [shape = 'u8[262144]{0}', space=vmem, size = 0x40000, scoped, tag = 'input window, operand 0']
    #allocation8 [shape = 's32[2]{0}', space=sflag, size = 0x8, scoped, tag = 'scoped memory for tpu_custom_call.1']
    #allocation9 [shape = 's32[2]{0}', space=sflag, size = 0x8, scoped, tag = 'scoped memory for tpu_custom_call.1']
    #allocation10 [shape = 'u8[512]{0}', space=vmem, size = 0x400, scoped, tag = 'input window, operand 1, single buffered']
    #allocation11 [shape = 's32[1]{0}', space=sflag, size = 0x4, scoped, tag = 'scoped memory for tpu_custom_call.1']
    #allocation12 [shape = 'u8[262144]{0}', space=vmem, size = 0x40000, scoped, tag = 'output window, operand 0']
    %8 = vsyncpa [#allocation8], 0
    %s9 = scalar_lea.sflag [#allocation8], 1
    %10 = vsyncpa %s9, 0
    %11 = vsyncpa [#allocation11], 0
    %12 = vsyncpa [#allocation9], 0
    %s13 = scalar_lea.sflag [#allocation9], 1
    %14 = vsyncpa %s13, 0
    loop: start=0, step=1, limit=4
    $region2: #{tpu_custom_call.1} parent=1 // loop_pre_header
      _
    $region3: #{tpu_custom_call.1} parent=1 // loop_header
      %s16 = sphi 0, %s20
      %p17 = scmp.ge.s32.totalorder %s16, 4
      %s23 = sphi 0, %s35
      %s24 = sphi 0, %s31
      %s25 = sphi 0, %s23
      %s26 = sphi 0, %s24
      %s27 = sphi 0, %s25
      %s28 = sphi 0, %s26
      %s42 = sphi 0, %s44
      %s45 = sphi 0, %s42
      %s46 = sphi 0, %s45
      %s62 = sphi 0, %s46
      %s66 = sphi 0, %s66
      %s68 = sphi 0, %s66
      %s69 = sphi 0, %s68
      %s83 = sphi 0, %s69
      %s87 = sphi 0, %s87
      %s89 = sphi 0, %s87
      %s90 = sphi 0, %s89
      %s104 = sphi 0, %s90
      %s112 = sphi 0, %s114
      %s115 = sphi 0, %s112
      %s116 = sphi 0, %s115
      %s132 = sphi 0, %s116
    $region4: #{tpu_custom_call.1} parent=1 // loop_header_branch
      %19 = sbr.rel (%p17) target = $region8
    $region5: #{tpu_custom_call.1} parent=1 // loop_body
      %s21 = ssub.s32 %s16, 1
      %s22 = ssub.s32 %s16, 2
      %s29 = sadd.s32 1, %s24
      %p30 = scmp.ge.s32.totalorder %s29, 1
      %s31 = scalar_select %p30, 0, %s29
      %s32 = sadd.s32 1, %s23
      %s33 = scalar_select %p30, %s32, %s23
      %p34 = scmp.ge.s32.totalorder %s33, 2
      %s35 = scalar_select %p34, 0, %s33
      %s36 = ssub.s32 1, %s23
      %s37 = smul.u32 %s36, %s24
      %s38 = ssub.s32 1, %s35
      %s39 = smul.u32 %s38, %s31
      %s40 = ssub.s32 %s37, %s39
      %p41 = scmp.eq.s32.totalorder %s40, 0
      %s43 = sadd.s32 %s42, 1
      %s44 = scalar_select %p41, %s42, %s43
      %p47 = pneg %p41
      %p48 = scmp.eq.s32.totalorder %s16, 1
      %p49 = por %p47, %p48
      %p50 = scmp.ne.s32.totalorder %s42, %s45
      %p51 = scmp.eq.s32.totalorder %s16, 0
      %p52 = por %p50, %p51
      %p53 = scmp.ne.s32.totalorder %s42, %s45
      %p54 = scmp.eq.s32.totalorder %s21, 1
      %p55 = por %p53, %p54
      %p56 = scmp.ne.s32.totalorder %s45, %s46
      %p57 = scmp.eq.s32.totalorder %s21, 0
      %p58 = por %p56, %p57
      %p59 = scmp.ne.s32.totalorder %s45, %s46
      %p60 = scmp.eq.s32.totalorder %s22, 1
      %p61 = por %p59, %p60
      %p63 = scmp.ne.s32.totalorder %s46, %s62
      %p64 = scmp.eq.s32.totalorder %s22, 0
      %p65 = por %p63, %p64
      %s67 = sadd.s32 %s66, 1
      %p70 = scmp.eq.s32.totalorder %s16, 1
      %p71 = scmp.ne.s32.totalorder %s66, %s68
      %p72 = scmp.eq.s32.totalorder %s16, 0
      %p73 = por %p71, %p72
      %p74 = scmp.ne.s32.totalorder %s66, %s68
      %p75 = scmp.eq.s32.totalorder %s21, 1
      %p76 = por %p74, %p75
      %p77 = scmp.ne.s32.totalorder %s68, %s69
      %p78 = scmp.eq.s32.totalorder %s21, 0
      %p79 = por %p77, %p78
      %p80 = scmp.ne.s32.totalorder %s68, %s69
      %p81 = scmp.eq.s32.totalorder %s22, 1
      %p82 = por %p80, %p81
      %p84 = scmp.ne.s32.totalorder %s69, %s83
      %p85 = scmp.eq.s32.totalorder %s22, 0
      %p86 = por %p84, %p85
      %s88 = sadd.s32 %s87, 1
      %p91 = scmp.eq.s32.totalorder %s16, 1
      %p92 = scmp.ne.s32.totalorder %s87, %s89
      %p93 = scmp.eq.s32.totalorder %s16, 0
      %p94 = por %p92, %p93
      %p95 = scmp.ne.s32.totalorder %s87, %s89
      %p96 = scmp.eq.s32.totalorder %s21, 1
      %p97 = por %p95, %p96
      %p98 = scmp.ne.s32.totalorder %s89, %s90
      %p99 = scmp.eq.s32.totalorder %s21, 0
      %p100 = por %p98, %p99
      %p101 = scmp.ne.s32.totalorder %s89, %s90
      %p102 = scmp.eq.s32.totalorder %s22, 1
      %p103 = por %p101, %p102
      %p105 = scmp.ne.s32.totalorder %s90, %s104
      %p106 = scmp.eq.s32.totalorder %s22, 0
      %p107 = por %p105, %p106
      %s108 = smul.u32 %s23, %s24
      %s109 = smul.u32 %s35, %s31
      %s110 = ssub.s32 %s108, %s109
      %p111 = scmp.eq.s32.totalorder %s110, 0
      %s113 = sadd.s32 %s112, 1
      %s114 = scalar_select %p111, %s112, %s113
      %p117 = pneg %p111
      %p118 = scmp.eq.s32.totalorder %s16, 1
      %p119 = por %p117, %p118
      %p120 = scmp.ne.s32.totalorder %s112, %s115
      %p121 = scmp.eq.s32.totalorder %s16, 0
      %p122 = por %p120, %p121
      %p123 = scmp.ne.s32.totalorder %s112, %s115
      %p124 = scmp.eq.s32.totalorder %s21, 1
      %p125 = por %p123, %p124
      %p126 = scmp.ne.s32.totalorder %s115, %s116
      %p127 = scmp.eq.s32.totalorder %s21, 0
      %p128 = por %p126, %p127
      %p129 = scmp.ne.s32.totalorder %s115, %s116
      %p130 = scmp.eq.s32.totalorder %s22, 1
      %p131 = por %p129, %p130
      %p133 = scmp.ne.s32.totalorder %s116, %s132
      %p134 = scmp.eq.s32.totalorder %s22, 0
      %p135 = por %p133, %p134
      %p136 = scmp.le.s32.totalorder 1, %s16
      %p137 = scmp.lt.s32.totalorder %s16, 3
      %p138 = pnand %p136, %p137
      %p139 = pneg %p138
      // Predicated region
      $region9: #{tpu_custom_call.1} parent=5 // pred_check
        _
      $region10: #{tpu_custom_call.1} parent=5 // pred_check_branch
        %141 = sbr.rel (%p138) target = $region12
      $region11: #{tpu_custom_call.1} parent=5 // pred_region
        %s142 = ssub.s32 %s16, 1
        // Predicated region
        $region13: #{tpu_custom_call.1} parent=11 // pred_check
          %p143 = pneg %p79
        $region14: #{tpu_custom_call.1} parent=11 // pred_check_branch
          %145 = sbr.rel (%p143) target = $region16
        $region15: #{tpu_custom_call.1} parent=11 // pred_region
          %147 = vsyncadd [#allocation11], 0
          %s149 = sshll.u32 %s1, 4
          %s150 = int_to_ptr.hbm [resolvable:$true] %s149
          %s151 = sshll.u32 [#allocation10], 4
          %s152 = int_to_ptr.vmem [resolvable:$true] %s151
          %154 = dma.hbm_to_vmem [thread:$0]  %s150, 16, %s152, [#allocation11]
        $region16: #{tpu_custom_call.1} parent=11 // pred_fallthru
          _
        // Predicated region
        $region17: #{tpu_custom_call.1} parent=11 // pred_check
          %p155 = pneg %p100
        $region18: #{tpu_custom_call.1} parent=11 // pred_check_branch
          %157 = sbr.rel (%p155) target = $region20
        $region19: #{tpu_custom_call.1} parent=11 // pred_region
          _
        $region20: #{tpu_custom_call.1} parent=11 // pred_fallthru
          _
      $region12: #{tpu_custom_call.1} parent=5 // pred_fallthru
        _
      %p158 = scmp.lt.s32.totalorder %s16, 2
      // Predicated region
      $region21: #{tpu_custom_call.1} parent=5 // pred_check
        %p159 = pneg %p158
      $region22: #{tpu_custom_call.1} parent=5 // pred_check_branch
        %161 = sbr.rel (%p159) target = $region24
      $region23: #{tpu_custom_call.1} parent=5 // pred_region
        // Predicated region
        $region25: #{tpu_custom_call.1} parent=23 // pred_check
          %p162 = pneg %p52
        $region26: #{tpu_custom_call.1} parent=23 // pred_check_branch
          %164 = sbr.rel (%p162) target = $region28
        $region27: #{tpu_custom_call.1} parent=23 // pred_region
          %s165 = sand.u32 %s42, 1
          %s166 = scalar_lea.sflag [#allocation8], %s165
          %s167 = sand.u32 %s42, 1
          %s168 = smul.addr %s167, 256
          %s169 = scalar_lea.vmem [#allocation7], %s168
          %s170 = ssub.s32 1, %s23
          %s171 = smul.u32 %s170, %s24
          %s172 = smul.u32 32, %s171
          %174 = vsyncadd %s166, 0
          %s175 = smul.addr %s172, 8
          %s176 = scalar_lea.hbm %s0, %s175
          %s177 = sshll.u32 %s176, 4
          %s178 = int_to_ptr.hbm [resolvable:$true] %s177
          %s179 = sshll.u32 %s169, 4
          %s180 = int_to_ptr.vmem [resolvable:$true] %s179
          %185 = dma.hbm_to_vmem [thread:$0]  %s178, 4096, %s180, %s166, 128, 128, 8
        $region28: #{tpu_custom_call.1} parent=23 // pred_fallthru
          _
      $region24: #{tpu_custom_call.1} parent=5 // pred_fallthru
        _
      %p186 = scmp.le.s32.totalorder 1, %s16
      %p187 = scmp.lt.s32.totalorder %s16, 3
      %p188 = pnand %p186, %p187
      %p189 = pneg %p188
      // Predicated region
      $region29: #{tpu_custom_call.1} parent=5 // pred_check
        _
      $region30: #{tpu_custom_call.1} parent=5 // pred_check_branch
        %191 = sbr.rel (%p188) target = $region32
      $region31: #{tpu_custom_call.1} parent=5 // pred_region
        %s192 = ssub.s32 %s16, 1
        %s193 = sand.u32 %s45, 1
        %s194 = scalar_lea.sflag [#allocation8], %s193
        %s195 = sand.u32 %s45, 1
        %s196 = smul.addr %s195, 256
        %s197 = scalar_lea.vmem [#allocation7], %s196
        // Predicated region
        $region33: #{tpu_custom_call.1} parent=31 // pred_check
          %p198 = pneg %p58
        $region34: #{tpu_custom_call.1} parent=31 // pred_check_branch
          %200 = sbr.rel (%p198) target = $region36
        $region35: #{tpu_custom_call.1} parent=31 // pred_region
          %202 = dma.done %s194, 4096
        $region36: #{tpu_custom_call.1} parent=31 // pred_fallthru
          _
        // Predicated region
        $region37: #{tpu_custom_call.1} parent=31 // pred_check
          %p203 = pneg %p79
        $region38: #{tpu_custom_call.1} parent=31 // pred_check_branch
          %205 = sbr.rel (%p203) target = $region40
        $region39: #{tpu_custom_call.1} parent=31 // pred_region
          %207 = dma.done [#allocation11], 16
        $region40: #{tpu_custom_call.1} parent=31 // pred_fallthru
          _
        %s208 = sand.u32 %s45, 1
        %s209 = scalar_lea.sflag [#allocation8], %s208
        %s210 = sand.u32 %s45, 1
        %s211 = smul.addr %s210, 256
        %s212 = scalar_lea.vmem [#allocation7], %s211
        %p213 = pneg %p58
        %p214 = pneg %p55
        %p215 = pneg %p79
        %p216 = pneg %p76
        %p217 = pneg %p100
        %p218 = pneg %p97
        %p219 = pneg %p128
        %p220 = pneg %p125
        %s221 = sand.u32 %s115, 1
        %s222 = scalar_lea.sflag [#allocation9], %s221
        %s223 = sand.u32 %s115, 1
        %s224 = smul.addr %s223, 256
        %s225 = scalar_lea.vmem [#allocation12], %s224
        %s226 = ssub.s32 1, %s25
        %s227 = smul.u32 %s226, %s26
        %s228 = smul.u32 32, %s227
        %s229 = smul.u32 %s25, %s26
        %s230 = smul.u32 32, %s229
        %p231 = scmp.eq.s32.totalorder %s25, 0
        %p232 = scmp.eq.s32.totalorder %s26, 0
        %p233 = pnand %p231, %p232
        %p234 = pneg %p233
        // Predicated region
        $region41: #{tpu_custom_call.1} parent=31 // pred_check
          _
        $region42: #{tpu_custom_call.1} parent=31 // pred_check_branch
          %236 = sbr.rel (%p233) target = $region44
        $region43: #{tpu_custom_call.1} parent=31 // pred_region
          %237 = vst [vmem:[#allocation3] sm:$0x1] 0.0
          %238 = vst [vmem:[#allocation4] sm:$0x1] 0.0
        $region44: #{tpu_custom_call.1} parent=31 // pred_fallthru
          _
        // Predicated region
        $region45: #{tpu_custom_call.1} parent=31 // pred_check
          %p239 = pneg %p231
        $region46: #{tpu_custom_call.1} parent=31 // pred_check_branch
          %241 = sbr.rel (%p239) target = $region48
        $region47: #{tpu_custom_call.1} parent=31 // pred_region
          %v242 = vld [vmem:[%s197] sm:$0xff]
          %v243 = vld [vmem:[%s197 + $0x8] sm:$0xff]
          %v244 = vld [vmem:[%s197 + $0x10] sm:$0xff]
          %v245 = vld [vmem:[%s197 + $0x18] sm:$0xff]
          %v246 = vld [vmem:[%s197 + $0x20] sm:$0xff]
          %v247 = vld [vmem:[%s197 + $0x28] sm:$0xff]
          %v248 = vld [vmem:[%s197 + $0x30] sm:$0xff]
          %v249 = vld [vmem:[%s197 + $0x38] sm:$0xff]
          %v250 = vld [vmem:[%s197 + $0x40] sm:$0xff]
          %v251 = vld [vmem:[%s197 + $0x48] sm:$0xff]
          %v252 = vld [vmem:[%s197 + $0x50] sm:$0xff]
          %v253 = vld [vmem:[%s197 + $0x58] sm:$0xff]
          %v254 = vld [vmem:[%s197 + $0x60] sm:$0xff]
          %v255 = vld [vmem:[%s197 + $0x68] sm:$0xff]
          %v256 = vld [vmem:[%s197 + $0x70] sm:$0xff]
          %v257 = vld [vmem:[%s197 + $0x78] sm:$0xff]
          %v258 = vld [vmem:[%s197 + $0x80] sm:$0xff]
          %v259 = vld [vmem:[%s197 + $0x88] sm:$0xff]
          %v260 = vld [vmem:[%s197 + $0x90] sm:$0xff]
          %v261 = vld [vmem:[%s197 + $0x98] sm:$0xff]
          %v262 = vld [vmem:[%s197 + $0xa0] sm:$0xff]
          %v263 = vld [vmem:[%s197 + $0xa8] sm:$0xff]
          %v264 = vld [vmem:[%s197 + $0xb0] sm:$0xff]
          %v265 = vld [vmem:[%s197 + $0xb8] sm:$0xff]
          %v266 = vld [vmem:[%s197 + $0xc0] sm:$0xff]
          %v267 = vld [vmem:[%s197 + $0xc8] sm:$0xff]
          %v268 = vld [vmem:[%s197 + $0xd0] sm:$0xff]
          %v269 = vld [vmem:[%s197 + $0xd8] sm:$0xff]
          %v270 = vld [vmem:[%s197 + $0xe0] sm:$0xff]
          %v271 = vld [vmem:[%s197 + $0xe8] sm:$0xff]
          %v272 = vld [vmem:[%s197 + $0xf0] sm:$0xff]
          %v273 = vld [vmem:[%s197 + $0xf8] sm:$0xff]
          %s274 = smul.u32 %s26, 256
          %s275 = scalar_lea.vmem [#allocation2], %s274
          %276 = vst [vmem:[%s275] sm:$0xff] %v242
          %277 = vst [vmem:[%s275 + $0x8] sm:$0xff] %v243
          %278 = vst [vmem:[%s275 + $0x10] sm:$0xff] %v244
          %279 = vst [vmem:[%s275 + $0x18] sm:$0xff] %v245
          %280 = vst [vmem:[%s275 + $0x20] sm:$0xff] %v246
          %281 = vst [vmem:[%s275 + $0x28] sm:$0xff] %v247
          %282 = vst [vmem:[%s275 + $0x30] sm:$0xff] %v248
          %283 = vst [vmem:[%s275 + $0x38] sm:$0xff] %v249
          %284 = vst [vmem:[%s275 + $0x40] sm:$0xff] %v250
          %285 = vst [vmem:[%s275 + $0x48] sm:$0xff] %v251
          %286 = vst [vmem:[%s275 + $0x50] sm:$0xff] %v252
          %287 = vst [vmem:[%s275 + $0x58] sm:$0xff] %v253
          %288 = vst [vmem:[%s275 + $0x60] sm:$0xff] %v254
          %289 = vst [vmem:[%s275 + $0x68] sm:$0xff] %v255
          %290 = vst [vmem:[%s275 + $0x70] sm:$0xff] %v256
          %291 = vst [vmem:[%s275 + $0x78] sm:$0xff] %v257
          %292 = vst [vmem:[%s275 + $0x80] sm:$0xff] %v258
          %293 = vst [vmem:[%s275 + $0x88] sm:$0xff] %v259
          %294 = vst [vmem:[%s275 + $0x90] sm:$0xff] %v260
          %295 = vst [vmem:[%s275 + $0x98] sm:$0xff] %v261
          %296 = vst [vmem:[%s275 + $0xa0] sm:$0xff] %v262
          %297 = vst [vmem:[%s275 + $0xa8] sm:$0xff] %v263
          %298 = vst [vmem:[%s275 + $0xb0] sm:$0xff] %v264
          %299 = vst [vmem:[%s275 + $0xb8] sm:$0xff] %v265
          %300 = vst [vmem:[%s275 + $0xc0] sm:$0xff] %v266
          %301 = vst [vmem:[%s275 + $0xc8] sm:$0xff] %v267
          %302 = vst [vmem:[%s275 + $0xd0] sm:$0xff] %v268
          %303 = vst [vmem:[%s275 + $0xd8] sm:$0xff] %v269
          %304 = vst [vmem:[%s275 + $0xe0] sm:$0xff] %v270
          %305 = vst [vmem:[%s275 + $0xe8] sm:$0xff] %v271
          %306 = vst [vmem:[%s275 + $0xf0] sm:$0xff] %v272
          %307 = vst [vmem:[%s275 + $0xf8] sm:$0xff] %v273
          %v308 = vadd.f32 %v242, %v243
          %v309 = vadd.f32 %v308, %v244
          %v310 = vadd.f32 %v309, %v245
          %v311 = vadd.f32 %v310, %v246
          %v312 = vadd.f32 %v311, %v247
          %v313 = vadd.f32 %v312, %v248
          %v314 = vadd.f32 %v313, %v249
          %v315 = vadd.f32 %v314, %v250
          %v316 = vadd.f32 %v315, %v251
          %v317 = vadd.f32 %v316, %v252
          %v318 = vadd.f32 %v317, %v253
          %v319 = vadd.f32 %v318, %v254
          %v320 = vadd.f32 %v319, %v255
          %v321 = vadd.f32 %v320, %v256
          %v322 = vadd.f32 %v321, %v257
          %v323 = vadd.f32 %v322, %v258
          %v324 = vadd.f32 %v323, %v259
          %v325 = vadd.f32 %v324, %v260
          %v326 = vadd.f32 %v325, %v261
          %v327 = vadd.f32 %v326, %v262
          %v328 = vadd.f32 %v327, %v263
          %v329 = vadd.f32 %v328, %v264
          %v330 = vadd.f32 %v329, %v265
          %v331 = vadd.f32 %v330, %v266
          %v332 = vadd.f32 %v331, %v267
          %v333 = vadd.f32 %v332, %v268
          %v334 = vadd.f32 %v333, %v269
          %v335 = vadd.f32 %v334, %v270
          %v336 = vadd.f32 %v335, %v271
          %v337 = vadd.f32 %v336, %v272
          %v338 = vadd.f32 %v337, %v273
          %v339 = vrot.slane %v338, 4
          %v340 = vadd.f32 %v338, %v339
          %v341 = vrot.slane %v340, 2
          %v342 = vadd.f32 %v340, %v341
          %v343 = vrot.slane %v342, 1
          %v344 = vadd.f32 %v342, %v343
          %v345 = vrcp.pop 256.0
          %v346 = vmul.f32 256.0, %v345
          %v347 = vsub.f32 1.0, %v346
          %v348 = vmul.f32 %v345, %v347
          %v349 = vadd.f32 %v345, %v348
          %vm350 = vweird.f32 %v345
          %v351 = vsel %vm350, %v345, %v349
          %v352 = vmul.f32 %v344, %v351
          %v353 = vsub.f32 %v242, %v352
          %v354 = vsub.f32 %v243, %v352
          %v355 = vsub.f32 %v244, %v352
          %v356 = vsub.f32 %v245, %v352
          %v357 = vsub.f32 %v246, %v352
          %v358 = vsub.f32 %v247, %v352
          %v359 = vsub.f32 %v248, %v352
          %v360 = vsub.f32 %v249, %v352
          %v361 = vsub.f32 %v250, %v352
          %v362 = vsub.f32 %v251, %v352
          %v363 = vsub.f32 %v252, %v352
          %v364 = vsub.f32 %v253, %v352
          %v365 = vsub.f32 %v254, %v352
          %v366 = vsub.f32 %v255, %v352
          %v367 = vsub.f32 %v256, %v352
          %v368 = vsub.f32 %v257, %v352
          %v369 = vsub.f32 %v258, %v352
          %v370 = vsub.f32 %v259, %v352
          %v371 = vsub.f32 %v260, %v352
          %v372 = vsub.f32 %v261, %v352
          %v373 = vsub.f32 %v262, %v352
          %v374 = vsub.f32 %v263, %v352
          %v375 = vsub.f32 %v264, %v352
          %v376 = vsub.f32 %v265, %v352
          %v377 = vsub.f32 %v266, %v352
          %v378 = vsub.f32 %v267, %v352
          %v379 = vsub.f32 %v268, %v352
          %v380 = vsub.f32 %v269, %v352
          %v381 = vsub.f32 %v270, %v352
          %v382 = vsub.f32 %v271, %v352
          %v383 = vsub.f32 %v272, %v352
          %v384 = vsub.f32 %v273, %v352
          %v385 = vmul.f32 %v353, %v353
          %v386 = vmul.f32 %v354, %v354
          %v387 = vmul.f32 %v355, %v355
          %v388 = vmul.f32 %v356, %v356
          %v389 = vmul.f32 %v357, %v357
          %v390 = vmul.f32 %v358, %v358
          %v391 = vmul.f32 %v359, %v359
          %v392 = vmul.f32 %v360, %v360
          %v393 = vmul.f32 %v361, %v361
          %v394 = vmul.f32 %v362, %v362
          %v395 = vmul.f32 %v363, %v363
          %v396 = vmul.f32 %v364, %v364
          %v397 = vmul.f32 %v365, %v365
          %v398 = vmul.f32 %v366, %v366
          %v399 = vmul.f32 %v367, %v367
          %v400 = vmul.f32 %v368, %v368
          %v401 = vmul.f32 %v369, %v369
          %v402 = vmul.f32 %v370, %v370
          %v403 = vmul.f32 %v371, %v371
          %v404 = vmul.f32 %v372, %v372
          %v405 = vmul.f32 %v373, %v373
          %v406 = vmul.f32 %v374, %v374
          %v407 = vmul.f32 %v375, %v375
          %v408 = vmul.f32 %v376, %v376
          %v409 = vmul.f32 %v377, %v377
          %v410 = vmul.f32 %v378, %v378
          %v411 = vmul.f32 %v379, %v379
          %v412 = vmul.f32 %v380, %v380
          %v413 = vmul.f32 %v381, %v381
          %v414 = vmul.f32 %v382, %v382
          %v415 = vmul.f32 %v383, %v383
          %v416 = vmul.f32 %v384, %v384
          %v417 = vadd.f32 %v385, %v386
          %v418 = vadd.f32 %v417, %v387
          %v419 = vadd.f32 %v418, %v388
          %v420 = vadd.f32 %v419, %v389
          %v421 = vadd.f32 %v420, %v390
          %v422 = vadd.f32 %v421, %v391
          %v423 = vadd.f32 %v422, %v392
          %v424 = vadd.f32 %v423, %v393
          %v425 = vadd.f32 %v424, %v394
          %v426 = vadd.f32 %v425, %v395
          %v427 = vadd.f32 %v426, %v396
          %v428 = vadd.f32 %v427, %v397
          %v429 = vadd.f32 %v428, %v398
          %v430 = vadd.f32 %v429, %v399
          %v431 = vadd.f32 %v430, %v400
          %v432 = vadd.f32 %v431, %v401
          %v433 = vadd.f32 %v432, %v402
          %v434 = vadd.f32 %v433, %v403
          %v435 = vadd.f32 %v434, %v404
          %v436 = vadd.f32 %v435, %v405
          %v437 = vadd.f32 %v436, %v406
          %v438 = vadd.f32 %v437, %v407
          %v439 = vadd.f32 %v438, %v408
          %v440 = vadd.f32 %v439, %v409
          %v441 = vadd.f32 %v440, %v410
          %v442 = vadd.f32 %v441, %v411
          %v443 = vadd.f32 %v442, %v412
          %v444 = vadd.f32 %v443, %v413
          %v445 = vadd.f32 %v444, %v414
          %v446 = vadd.f32 %v445, %v415
          %v447 = vadd.f32 %v446, %v416
          %v448 = vrot.slane %v447, 4
          %v449 = vadd.f32 %v447, %v448
          %v450 = vrot.slane %v449, 2
          %v451 = vadd.f32 %v449, %v450
          %v452 = vrot.slane %v451, 1
          %v453 = vadd.f32 %v451, %v452
          %s454 = scvt.s32.f32 %s274
          %s455 = sadd.f32 %s454, 256.0
          %v456 = vld [vmem:[#allocation3] sm:$0x1]
          %v457 = vsub.f32 %v352, %v456
          %v458 = vstv %s455
          %v459 = vrcp.pop %v458
          %v460 = vmul.f32 %v458, %v459
          %v461 = vsub.f32 1.0, %v460
          %v462 = vmul.f32 %v459, %v461
          %v463 = vadd.f32 %v459, %v462
          %vm464 = vweird.f32 %v458
          %vm465 = vweird.f32 %v459
          %vm466 = vmor %vm464, %vm465
          %v467 = vsel %vm466, %v459, %v463
          %v468 = vand.u32 2147483647, %v458
          %vm469 = vcmp.eq.f32.partialorder %v468, 8.507059e+37
          %v470 = vand.u32 %v458, 2147483648
          %v471 = vor.u32 1.1754944e-38, %v470
          %v472 = vsel %vm469, %v471, %v467
          %s473 = vtos %v472
          %s474 = smul.f32 256.0, %s473
          %v475 = vstv %s474
          %v476 = vmul.f32 %v457, %v475
          %v477 = vadd.f32 %v456, %v476
          %478 = vst [vmem:[#allocation3] sm:$0x1] %v477
          %v479 = vld [vmem:[#allocation4] sm:$0x1]
          %v480 = vadd.f32 %v479, %v453
          %v481 = vmul.f32 %v457, %v457
          %s482 = smul.f32 %s454, 256.0
          %v483 = vstv %s455
          %v484 = vrcp.pop %v483
          %v485 = vmul.f32 %v483, %v484
          %v486 = vsub.f32 1.0, %v485
          %v487 = vmul.f32 %v484, %v486
          %v488 = vadd.f32 %v484, %v487
          %vm489 = vweird.f32 %v483
          %vm490 = vweird.f32 %v484
          %vm491 = vmor %vm489, %vm490
          %v492 = vsel %vm491, %v484, %v488
          %v493 = vand.u32 2147483647, %v483
          %vm494 = vcmp.eq.f32.partialorder %v493, 8.507059e+37
          %v495 = vand.u32 %v483, 2147483648
          %v496 = vor.u32 1.1754944e-38, %v495
          %v497 = vsel %vm494, %v496, %v492
          %s498 = vtos %v497
          %s499 = smul.f32 %s482, %s498
          %v500 = vstv %s499
          %v501 = vmul.f32 %v481, %v500
          %v502 = vadd.f32 %v480, %v501
          %503 = vst [vmem:[#allocation4] sm:$0x1] %v502
        $region48: #{tpu_custom_call.1} parent=31 // pred_fallthru
          _
        // Predicated region
        $region49: #{tpu_custom_call.1} parent=31 // pred_check
          _
        $region50: #{tpu_custom_call.1} parent=31 // pred_check_branch
          %505 = sbr.rel (%p233) target = $region52
        $region51: #{tpu_custom_call.1} parent=31 // pred_region
          %v506 = vld [vmem:[#allocation4] sm:$0x1]
          %v507 = vmul.f32 %v506, 0.00390625
          %v508 = vld [vmem:[#allocation10] sm:$0x1]
          %v509 = vadd.f32 %v507, 1e-05
          %v510 = vrsqrt.pop %v509
          %v511 = vmul.f32 %v510, %v509
          %v512 = vmul.f32 %v511, %v510
          %v513 = vmul.f32 0.5, %v512
          %v514 = vsub.f32 1.5, %v513
          %v515 = vmul.f32 %v510, %v514
          %vm516 = vweird.f32 %v509
          %vm517 = vweird.f32 %v510
          %vm518 = vmor %vm516, %vm517
          %v519 = vsel %vm518, %v510, %v515
          %v520 = vmul.f32 %v508, %v519
          %v521 = vld [vmem:[%s2] sm:$0x1]
          %v522 = vld [vmem:[#allocation3] sm:$0x1]
          %v523 = vmul.f32 %v522, %v520
          %v524 = vsub.f32 %v521, %v523
          %525 = vst [vmem:[#allocation5] sm:$0x1] %v520
          %526 = vst [vmem:[#allocation6] sm:$0x1] %v524
        $region52: #{tpu_custom_call.1} parent=31 // pred_fallthru
          _
        %p527 = scmp.eq.s32.totalorder %s25, 1
        // Predicated region
        $region53: #{tpu_custom_call.1} parent=31 // pred_check
          %p528 = pneg %p527
        $region54: #{tpu_custom_call.1} parent=31 // pred_check_branch
          %530 = sbr.rel (%p528) target = $region56
        $region55: #{tpu_custom_call.1} parent=31 // pred_region
          %s531 = smul.u32 %s26, 256
          %s532 = scalar_lea.vmem [#allocation2], %s531
          %v533 = vld [vmem:[%s532] sm:$0xff]
          %v534 = vld [vmem:[%s532 + $0x8] sm:$0xff]
          %v535 = vld [vmem:[%s532 + $0x10] sm:$0xff]
          %v536 = vld [vmem:[%s532 + $0x18] sm:$0xff]
          %v537 = vld [vmem:[%s532 + $0x20] sm:$0xff]
          %v538 = vld [vmem:[%s532 + $0x28] sm:$0xff]
          %v539 = vld [vmem:[%s532 + $0x30] sm:$0xff]
          %v540 = vld [vmem:[%s532 + $0x38] sm:$0xff]
          %v541 = vld [vmem:[%s532 + $0x40] sm:$0xff]
          %v542 = vld [vmem:[%s532 + $0x48] sm:$0xff]
          %v543 = vld [vmem:[%s532 + $0x50] sm:$0xff]
          %v544 = vld [vmem:[%s532 + $0x58] sm:$0xff]
          %v545 = vld [vmem:[%s532 + $0x60] sm:$0xff]
          %v546 = vld [vmem:[%s532 + $0x68] sm:$0xff]
          %v547 = vld [vmem:[%s532 + $0x70] sm:$0xff]
          %v548 = vld [vmem:[%s532 + $0x78] sm:$0xff]
          %v549 = vld [vmem:[%s532 + $0x80] sm:$0xff]
          %v550 = vld [vmem:[%s532 + $0x88] sm:$0xff]
          %v551 = vld [vmem:[%s532 + $0x90] sm:$0xff]
          %v552 = vld [vmem:[%s532 + $0x98] sm:$0xff]
          %v553 = vld [vmem:[%s532 + $0xa0] sm:$0xff]
          %v554 = vld [vmem:[%s532 + $0xa8] sm:$0xff]
          %v555 = vld [vmem:[%s532 + $0xb0] sm:$0xff]
          %v556 = vld [vmem:[%s532 + $0xb8] sm:$0xff]
          %v557 = vld [vmem:[%s532 + $0xc0] sm:$0xff]
          %v558 = vld [vmem:[%s532 + $0xc8] sm:$0xff]
          %v559 = vld [vmem:[%s532 + $0xd0] sm:$0xff]
          %v560 = vld [vmem:[%s532 + $0xd8] sm:$0xff]
          %v561 = vld [vmem:[%s532 + $0xe0] sm:$0xff]
          %v562 = vld [vmem:[%s532 + $0xe8] sm:$0xff]
          %v563 = vld [vmem:[%s532 + $0xf0] sm:$0xff]
          %v564 = vld [vmem:[%s532 + $0xf8] sm:$0xff]
          %v565 = vld [vmem:[#allocation5] sm:$0x1]
          %v567 = vperm.slane %v565, 0
          %v569 = vmul.f32 %v533, %v567
          %v570 = vmul.f32 %v534, %v567
          %v571 = vmul.f32 %v535, %v567
          %v572 = vmul.f32 %v536, %v567
          %v573 = vmul.f32 %v537, %v567
          %v574 = vmul.f32 %v538, %v567
          %v575 = vmul.f32 %v539, %v567
          %v576 = vmul.f32 %v540, %v567
          %v577 = vmul.f32 %v541, %v567
          %v578 = vmul.f32 %v542, %v567
          %v579 = vmul.f32 %v543, %v567
          %v580 = vmul.f32 %v544, %v567
          %v581 = vmul.f32 %v545, %v567
          %v582 = vmul.f32 %v546, %v567
          %v583 = vmul.f32 %v547, %v567
          %v584 = vmul.f32 %v548, %v567
          %v585 = vmul.f32 %v549, %v567
          %v586 = vmul.f32 %v550, %v567
          %v587 = vmul.f32 %v551, %v567
          %v588 = vmul.f32 %v552, %v567
          %v589 = vmul.f32 %v553, %v567
          %v590 = vmul.f32 %v554, %v567
          %v591 = vmul.f32 %v555, %v567
          %v592 = vmul.f32 %v556, %v567
          %v593 = vmul.f32 %v557, %v567
          %v594 = vmul.f32 %v558, %v567
          %v595 = vmul.f32 %v559, %v567
          %v596 = vmul.f32 %v560, %v567
          %v597 = vmul.f32 %v561, %v567
          %v598 = vmul.f32 %v562, %v567
          %v599 = vmul.f32 %v563, %v567
          %v600 = vmul.f32 %v564, %v567
          %v601 = vld [vmem:[#allocation6] sm:$0x1]
          %v603 = vperm.slane %v601, 0
          %v605 = vadd.f32 %v569, %v603
          %v606 = vadd.f32 %v570, %v603
          %v607 = vadd.f32 %v571, %v603
          %v608 = vadd.f32 %v572, %v603
          %v609 = vadd.f32 %v573, %v603
          %v610 = vadd.f32 %v574, %v603
          %v611 = vadd.f32 %v575, %v603
          %v612 = vadd.f32 %v576, %v603
          %v613 = vadd.f32 %v577, %v603
          %v614 = vadd.f32 %v578, %v603
          %v615 = vadd.f32 %v579, %v603
          %v616 = vadd.f32 %v580, %v603
          %v617 = vadd.f32 %v581, %v603
          %v618 = vadd.f32 %v582, %v603
          %v619 = vadd.f32 %v583, %v603
          %v620 = vadd.f32 %v584, %v603
          %v621 = vadd.f32 %v585, %v603
          %v622 = vadd.f32 %v586, %v603
          %v623 = vadd.f32 %v587, %v603
          %v624 = vadd.f32 %v588, %v603
          %v625 = vadd.f32 %v589, %v603
          %v626 = vadd.f32 %v590, %v603
          %v627 = vadd.f32 %v591, %v603
          %v628 = vadd.f32 %v592, %v603
          %v629 = vadd.f32 %v593, %v603
          %v630 = vadd.f32 %v594, %v603
          %v631 = vadd.f32 %v595, %v603
          %v632 = vadd.f32 %v596, %v603
          %v633 = vadd.f32 %v597, %v603
          %v634 = vadd.f32 %v598, %v603
          %v635 = vadd.f32 %v599, %v603
          %v636 = vadd.f32 %v600, %v603
          %v637 = vmax.f32 %v605, 0.0
          %v638 = vmax.f32 %v606, 0.0
          %v639 = vmax.f32 %v607, 0.0
          %v640 = vmax.f32 %v608, 0.0
          %v641 = vmax.f32 %v609, 0.0
          %v642 = vmax.f32 %v610, 0.0
          %v643 = vmax.f32 %v611, 0.0
          %v644 = vmax.f32 %v612, 0.0
          %v645 = vmax.f32 %v613, 0.0
          %v646 = vmax.f32 %v614, 0.0
          %v647 = vmax.f32 %v615, 0.0
          %v648 = vmax.f32 %v616, 0.0
          %v649 = vmax.f32 %v617, 0.0
          %v650 = vmax.f32 %v618, 0.0
          %v651 = vmax.f32 %v619, 0.0
          %v652 = vmax.f32 %v620, 0.0
          %v653 = vmax.f32 %v621, 0.0
          %v654 = vmax.f32 %v622, 0.0
          %v655 = vmax.f32 %v623, 0.0
          %v656 = vmax.f32 %v624, 0.0
          %v657 = vmax.f32 %v625, 0.0
          %v658 = vmax.f32 %v626, 0.0
          %v659 = vmax.f32 %v627, 0.0
          %v660 = vmax.f32 %v628, 0.0
          %v661 = vmax.f32 %v629, 0.0
          %v662 = vmax.f32 %v630, 0.0
          %v663 = vmax.f32 %v631, 0.0
          %v664 = vmax.f32 %v632, 0.0
          %v665 = vmax.f32 %v633, 0.0
          %v666 = vmax.f32 %v634, 0.0
          %v667 = vmax.f32 %v635, 0.0
          %v668 = vmax.f32 %v636, 0.0
          %669 = vst [vmem:[%s225] sm:$0xff] %v637
          %670 = vst [vmem:[%s225 + $0x8] sm:$0xff] %v638
          %671 = vst [vmem:[%s225 + $0x10] sm:$0xff] %v639
          %672 = vst [vmem:[%s225 + $0x18] sm:$0xff] %v640
          %673 = vst [vmem:[%s225 + $0x20] sm:$0xff] %v641
          %674 = vst [vmem:[%s225 + $0x28] sm:$0xff] %v642
          %675 = vst [vmem:[%s225 + $0x30] sm:$0xff] %v643
          %676 = vst [vmem:[%s225 + $0x38] sm:$0xff] %v644
          %677 = vst [vmem:[%s225 + $0x40] sm:$0xff] %v645
          %678 = vst [vmem:[%s225 + $0x48] sm:$0xff] %v646
          %679 = vst [vmem:[%s225 + $0x50] sm:$0xff] %v647
          %680 = vst [vmem:[%s225 + $0x58] sm:$0xff] %v648
          %681 = vst [vmem:[%s225 + $0x60] sm:$0xff] %v649
          %682 = vst [vmem:[%s225 + $0x68] sm:$0xff] %v650
          %683 = vst [vmem:[%s225 + $0x70] sm:$0xff] %v651
          %684 = vst [vmem:[%s225 + $0x78] sm:$0xff] %v652
          %685 = vst [vmem:[%s225 + $0x80] sm:$0xff] %v653
          %686 = vst [vmem:[%s225 + $0x88] sm:$0xff] %v654
          %687 = vst [vmem:[%s225 + $0x90] sm:$0xff] %v655
          %688 = vst [vmem:[%s225 + $0x98] sm:$0xff] %v656
          %689 = vst [vmem:[%s225 + $0xa0] sm:$0xff] %v657
          %690 = vst [vmem:[%s225 + $0xa8] sm:$0xff] %v658
          %691 = vst [vmem:[%s225 + $0xb0] sm:$0xff] %v659
          %692 = vst [vmem:[%s225 + $0xb8] sm:$0xff] %v660
          %693 = vst [vmem:[%s225 + $0xc0] sm:$0xff] %v661
          %694 = vst [vmem:[%s225 + $0xc8] sm:$0xff] %v662
          %695 = vst [vmem:[%s225 + $0xd0] sm:$0xff] %v663
          %696 = vst [vmem:[%s225 + $0xd8] sm:$0xff] %v664
          %697 = vst [vmem:[%s225 + $0xe0] sm:$0xff] %v665
          %698 = vst [vmem:[%s225 + $0xe8] sm:$0xff] %v666
          %699 = vst [vmem:[%s225 + $0xf0] sm:$0xff] %v667
          %700 = vst [vmem:[%s225 + $0xf8] sm:$0xff] %v668
        $region56: #{tpu_custom_call.1} parent=31 // pred_fallthru
          _
        %s701 = sand.u32 %s115, 1
        %s702 = scalar_lea.sflag [#allocation9], %s701
        %s703 = sand.u32 %s115, 1
        %s704 = smul.addr %s703, 256
        %s705 = scalar_lea.vmem [#allocation12], %s704
        // Predicated region
        $region57: #{tpu_custom_call.1} parent=31 // pred_check
          %p706 = pneg %p125
        $region58: #{tpu_custom_call.1} parent=31 // pred_check_branch
          %708 = sbr.rel (%p706) target = $region60
        $region59: #{tpu_custom_call.1} parent=31 // pred_region
          %s709 = smul.u32 %s25, %s26
          %s710 = smul.u32 32, %s709
          %712 = vsyncadd %s702, 0
          %s713 = smul.addr %s710, 8
          %s714 = scalar_lea.hbm %s3, %s713
          %s715 = sshll.u32 %s705, 4
          %s716 = int_to_ptr.vmem [resolvable:$true] %s715
          %s717 = sshll.u32 %s714, 4
          %s718 = int_to_ptr.hbm [resolvable:$true] %s717
          %723 = dma.vmem_to_hbm [thread:$0]  %s716, 4096, %s718, %s702, 128, 128, 8
        $region60: #{tpu_custom_call.1} parent=31 // pred_fallthru
          _
      $region32: #{tpu_custom_call.1} parent=5 // pred_fallthru
        _
      %p724 = scmp.le.s32.totalorder 2, %s16
      // Predicated region
      $region61: #{tpu_custom_call.1} parent=5 // pred_check
        %p725 = pneg %p724
      $region62: #{tpu_custom_call.1} parent=5 // pred_check_branch
        %727 = sbr.rel (%p725) target = $region64
      $region63: #{tpu_custom_call.1} parent=5 // pred_region
        %s728 = ssub.s32 %s16, 2
        // Predicated region
        $region65: #{tpu_custom_call.1} parent=63 // pred_check
          %p729 = pneg %p131
        $region66: #{tpu_custom_call.1} parent=63 // pred_check_branch
          %731 = sbr.rel (%p729) target = $region68
        $region67: #{tpu_custom_call.1} parent=63 // pred_region
          %s732 = sand.u32 %s116, 1
          %s733 = scalar_lea.sflag [#allocation9], %s732
          %s734 = sand.u32 %s116, 1
          %s735 = smul.addr %s734, 256
          %s736 = scalar_lea.vmem [#allocation12], %s735
          %738 = dma.done %s733, 4096
        $region68: #{tpu_custom_call.1} parent=63 // pred_fallthru
          _
      $region64: #{tpu_custom_call.1} parent=5 // pred_fallthru
        _
    $region6: #{tpu_custom_call.1} parent=1 // loop_footer
      %s20 = sadd.s32 1, %s16
    $region7: #{tpu_custom_call.1} parent=1 // loop_footer_branch
      %15 = sbr.rel target = $region3
    $region8: #{tpu_custom_call.1} parent=1 // loop_exit
      _
    %739 = vsyncpa [#allocation8], 1
    %s740 = scalar_lea.sflag [#allocation8], 1
    %741 = vsyncpa %s740, 1
    %742 = vsyncpa [#allocation11], 1
    %743 = vsyncpa [#allocation9], 1
    %s744 = scalar_lea.sflag [#allocation9], 1
    %745 = vsyncpa %s744, 1

</llo_original>
